<compile_context>
chip_gen: v7x
topology: tpu7x:2x2x1
jax: 0.10.0
libtpu: 0.0.40
codegen_flags: <defaults>
</compile_context>

<pallas_src>
import math
import jax
import jax.numpy as jnp
from jax.experimental import pallas as pl
from jax.experimental.pallas import tpu as pltpu


# Conservative budgets: safe on v5e/v6e (128 MiB physical VMEM) and v7x (64 MiB).
_VMEM_BUDGET_BYTES = 40 * 1024 * 1024   # used for block sizing
_VMEM_LIMIT_BYTES = 48 * 1024 * 1024    # scoped limit handed to the compiler


def _round_up(x, m):
    return (x + m - 1) // m * m


def _choose_tiles(N, S, D, itemsize, max_nb=512):
    """Pick (Nb, Sb): batch rows and sequence rows per grid step.

    Budget model (bytes): double-buffered V block + double-buffered output +
    f32 accumulator scratch + double-buffered fused weight + bias.
    """
    d_lane = _round_up(max(D, 128), 128)          # last dim is lane-padded to 128
    row_f32 = d_lane * 4
    fixed = 2 * D * d_lane * 4 + 2 * 8 * row_f32  # fused weight + (padded) bias
    avail = max(_VMEM_BUDGET_BYTES - fixed, 2 * 1024 * 1024)

    def max_rows(sb):
        return avail // (2 * sb * d_lane * itemsize + 3 * row_f32)

    if N < 8:
        if max_rows(S) >= N:
            return N, S                            # single tiny block, Nb == N (full dim)
        nb = N
    elif max_rows(S) >= 8:
        nb = (min(max_rows(S), max_nb, N) // 8) * 8
        if nb >= N and N >= 16:
            # Split the batch axis into >= 2 blocks so v7x's 2 TensorCores both work.
            nb = min(nb, _round_up(pl.cdiv(N, 2), 8))
        return int(nb), S
    else:
        nb = 8

    # Whole-S block does not fit -> split the sequence (reduction) axis.
    sb = avail // (2 * nb * d_lane * itemsize)
    sb = max(8, (sb // 8) * 8)
    sb = min(sb, S)
    return int(nb), int(sb)


def _make_kernel(S, Sb, n_s_blocks):
    need_mask = (S % Sb) != 0   # static: only emitted when the S tile has a ragged tail

    def kernel(v_ref, wf_ref, bf_ref, o_ref, acc_ref):
        # v_ref: (Nb, Sb, D)   wf_ref: (D, D)   bf_ref: (1, D)
        # o_ref: (Nb, D)       acc_ref: VMEM f32 (Nb, D)
        s = pl.program_id(1)

        @pl.when(s == 0)
        def _():
            acc_ref[...] = jnp.zeros_like(acc_ref)

        v = v_ref[...]
        if need_mask:
            s_idx = Sb * s + jax.lax.broadcasted_iota(jnp.int32, v.shape, 1)
            v = jnp.where(s_idx < S, v, jnp.zeros_like(v))

        # Attention weights are identically 1 (softmax over a singleton axis), so the
        # weighted sum over S is a plain sum.  Accumulate in f32.
        acc_ref[...] += jnp.sum(v.astype(jnp.float32), axis=1)          # (Nb, D)

        @pl.when(s == n_s_blocks - 1)
        def _():
            out = (jnp.dot(acc_ref[...], wf_ref[...],
                           preferred_element_type=jnp.float32)
                   + bf_ref[...])                                        # (Nb, D)
            o_ref[...] = out.astype(o_ref.dtype)

    return kernel


def summary_with_attention(Q, K, V, params, n_heads, max_nb=512, tile_override=None):
    """Pallas forward of SummaryWithAttention.

    Q, K and n_heads only feed the softmax-over-a-singleton-axis path, whose weights
    are identically one, so they are mathematically irrelevant to the output.
    """
    del Q, K, n_heads  # dead path (see module-level comment)

    N, S, D = V.shape
    itemsize = jnp.dtype(V.dtype).itemsize

    if tile_override is not None:
        Nb, Sb = tile_override
    else:
        Nb, Sb = _choose_tiles(N, S, D, itemsize, max_nb=max_nb)
    n_blocks = pl.cdiv(N, Nb)
    s_blocks = pl.cdiv(S, Sb)

    # Fuse the two projections once, outside the kernel (pure f32 re-association):
    #   (sum_s V) @ Wv @ Wo + S*(bv @ Wo) + bo  ==  (sum_s V) @ Wf + bf
    wf = (params["wv"] @ params["wo"]).astype(jnp.float32)                       # (D, D)
    bf = (float(S) * (params["bv"] @ params["wo"]) + params["bo"]).astype(jnp.float32)

    # Deeper pipelining only when per-step blocks are tiny (per-step DMA latency).
    v_map = lambda n, s: (n, s, 0)
    v_block_bytes = Nb * Sb * D * itemsize
    total_steps = n_blocks * s_blocks
    if v_block_bytes < (1 << 20) and total_steps >= 4:
        try:
            v_spec = pl.BlockSpec((Nb, Sb, D), v_map, pipeline_mode=pl.Buffered(3))
        except TypeError:
            v_spec = pl.BlockSpec((Nb, Sb, D), v_map)
    else:
        v_spec = pl.BlockSpec((Nb, Sb, D), v_map)

    cost = pl.CostEstimate(
        flops=2 * N * D * D + N * S * D,
        bytes_accessed=N * S * D * itemsize + N * D * 4 + D * D * 4 + D * 4,
        transcendentals=0,
    )

    out2d = pl.pallas_call(
        _make_kernel(S, Sb, s_blocks),
        out_shape=jax.ShapeDtypeStruct((N, D), jnp.float32),
        grid=(n_blocks, s_blocks),
        in_specs=[
            v_spec,                                      # V (only live input tensor)
            pl.BlockSpec((D, D), lambda n, s: (0, 0)),   # fused weight  Wv @ Wo
            pl.BlockSpec((1, D), lambda n, s: (0, 0)),   # fused bias
        ],
        out_specs=pl.BlockSpec((Nb, D), lambda n, s: (n, 0)),
        scratch_shapes=[pltpu.VMEM((Nb, D), jnp.float32)],
        compiler_params=pltpu.CompilerParams(
            dimension_semantics=("parallel", "arbitrary"),
            vmem_limit_bytes=_VMEM_LIMIT_BYTES),
        cost_estimate=cost,
    )(V, wf, bf)

    return out2d.reshape(N, 1, D)


def reference_forward(Q, K, V, params, n_heads):
    """Plain-JAX transcription of the full PyTorch forward (for validation)."""
    N, S, D = K.shape
    head_dim = D // n_heads
    qp = Q @ params["wq"] + params["bq"]                               # (N, 1, D)
    kp = K @ params["wk"] + params["bk"]                               # (N, S, D)
    vp = V @ params["wv"] + params["bv"]                               # (N, S, D)
    q4 = qp.reshape(N, 1, n_heads, head_dim)                           # (N, 1, H, Dh)
    k4 = kp.reshape(N, S, n_heads, head_dim).transpose(0, 2, 1, 3)     # (N, H, S, Dh)
    v4 = vp.reshape(N, S, n_heads, head_dim).transpose(0, 2, 1, 3)     # (N, H, S, Dh)
    scores = jnp.einsum('npqk,nqsk->nqsp', q4, k4) / math.sqrt(head_dim)  # (N, H, S, 1)
    w = jax.nn.softmax(scores, axis=-1)
    wv = jnp.einsum('nqsp,nqsk->nqpk', w, v4)                          # (N, H, 1, Dh)
    comb = wv.transpose(0, 2, 1, 3).reshape(N, 1, D)
    return comb @ params["wo"] + params["bo"]


if __name__ == "__main__":
    N, S, d_model, n_heads = 2, 8, 32, 4

    key = jax.random.PRNGKey(0)
    keys = jax.random.split(key, 11)
    scale = 1.0 / math.sqrt(d_model)
    params = {
        "wq": jax.random.normal(keys[0], (d_model, d_model), jnp.float32) * scale,
        "bq": jax.random.normal(keys[1], (1, d_model), jnp.float32) * 0.1,
        "wk": jax.random.normal(keys[2], (d_model, d_model), jnp.float32) * scale,
        "bk": jax.random.normal(keys[3], (1, d_model), jnp.float32) * 0.1,
        "wv": jax.random.normal(keys[4], (d_model, d_model), jnp.float32) * scale,
        "bv": jax.random.normal(keys[5], (1, d_model), jnp.float32) * 0.1,
        "wo": jax.random.normal(keys[6], (d_model, d_model), jnp.float32) * scale,
        "bo": jax.random.normal(keys[7], (1, d_model), jnp.float32) * 0.1,
    }

    # --- test 1: tiny batch, single block --------------------------------------------
    Q = jax.random.normal(keys[8], (N, 1, d_model), jnp.float32)
    K = jax.random.normal(keys[9], (N, S, d_model), jnp.float32)
    V = jax.random.normal(keys[10], (N, S, d_model), jnp.float32)

    out = jax.block_until_ready(summary_with_attention(Q, K, V, params, n_heads))
    ref = reference_forward(Q, K, V, params, n_heads)
    assert out.shape == (N, 1, d_model)
    assert jnp.allclose(out, ref, atol=1e-4, rtol=1e-4), "mismatch vs JAX reference"

    # --- test 2: multi-block batch with a partial last N block (no padding copy) ------
    N2 = 20
    k2 = jax.random.split(jax.random.PRNGKey(1), 3)
    Q2 = jax.random.normal(k2[0], (N2, 1, d_model), jnp.float32)
    K2 = jax.random.normal(k2[1], (N2, S, d_model), jnp.float32)
    V2 = jax.random.normal(k2[2], (N2, S, d_model), jnp.float32)
    out2 = jax.block_until_ready(summary_with_attention(Q2, K2, V2, params, n_heads))
    ref2 = reference_forward(Q2, K2, V2, params, n_heads)
    assert out2.shape == (N2, 1, d_model)
    assert jnp.allclose(out2, ref2, atol=1e-4, rtol=1e-4), "mismatch (batched path)"

    # --- test 3: forced small tiles -> S-reduction grid axis + ragged S mask ----------
    S3, N3 = 12, 20
    k3 = jax.random.split(jax.random.PRNGKey(2), 3)
    Q3 = jax.random.normal(k3[0], (N3, 1, d_model), jnp.float32)
    K3 = jax.random.normal(k3[1], (N3, S3, d_model), jnp.float32)
    V3 = jax.random.normal(k3[2], (N3, S3, d_model), jnp.float32)
    out3 = jax.block_until_ready(
        summary_with_attention(Q3, K3, V3, params, n_heads, tile_override=(8, 8)))
    ref3 = reference_forward(Q3, K3, V3, params, n_heads)
    assert out3.shape == (N3, 1, d_model)
    assert jnp.allclose(out3, ref3, atol=1e-4, rtol=1e-4), "mismatch (S-split path)"

    print("KERNEL_OK")
</pallas_src>

<mosaic_0001>
module attributes {stable_mosaic.version = 11 : i64} {
  func.func @kernel(%arg0: i32, %arg1: i32, %arg2: memref<2x8x32xf32, #tpu.memory_space<vmem>>, %arg3: memref<32x32xf32, #tpu.memory_space<vmem>>, %arg4: memref<1x32xf32, #tpu.memory_space<vmem>>, %arg5: memref<2x32xf32, #tpu.memory_space<vmem>>, %arg6: memref<2x32xf32, #tpu.memory_space<vmem>>) attributes {dimension_semantics = [#tpu.dimension_semantics<parallel>, #tpu.dimension_semantics<arbitrary>], iteration_bounds = array<i64: 1, 1>, scalar_prefetch = 0 : i64, scratch_operands = 1 : i64, tpu.core_type = #tpu.core_type<tc>, window_params = [{transform_indices = @transform_0, window_bounds = array<i64: 2, 8, 32>}, {pipeline_mode = #tpu.pipeline_mode<synchronous>, transform_indices = @transform_1, window_bounds = array<i64: 32, 32>}, {pipeline_mode = #tpu.pipeline_mode<synchronous>, transform_indices = @transform_2, window_bounds = array<i64: 1, 32>}, {transform_indices = @transform_3, window_bounds = array<i64: 2, 32>}]} {
    %c0_i32 = arith.constant 0 : i32
    %0 = arith.cmpi eq, %arg1, %c0_i32 : i32
    %1 = arith.extui %0 : i1 to i32
    %c0_i32_0 = arith.constant 0 : i32
    %2 = arith.cmpi ne, %1, %c0_i32_0 : i32
    scf.if %2 {
      %cst_9 = arith.constant 0.000000e+00 : f32
      %11 = vector.broadcast %cst_9 : f32 to vector<2x32xf32>
      %c0_10 = arith.constant 0 : index
      %c0_11 = arith.constant 0 : index
      %12 = vector.load %arg6[%c0_10, %c0_11] : memref<2x32xf32, #tpu.memory_space<vmem>>, vector<2x32xf32>
      tpu.vector_store %arg6[%c0_10, %c0_11], %11 {strides = array<i32>} : memref<2x32xf32, #tpu.memory_space<vmem>>, vector<2x32xf32>,
    } else {
    }
    %c0 = arith.constant 0 : index
    %c0_1 = arith.constant 0 : index
    %c0_2 = arith.constant 0 : index
    %3 = vector.load %arg2[%c0, %c0_1, %c0_2] : memref<2x8x32xf32, #tpu.memory_space<vmem>>, vector<2x8x32xf32>
    %c0_3 = arith.constant 0 : index
    %c0_4 = arith.constant 0 : index
    %4 = vector.load %arg6[%c0_3, %c0_4] : memref<2x32xf32, #tpu.memory_space<vmem>>, vector<2x32xf32>
    %cst = arith.constant dense<0.000000e+00> : vector<2x32xf32>
    %5 = vector.multi_reduction <add>, %3, %cst [1] : vector<2x8x32xf32> to vector<2x32xf32>
    %6 = arith.addf %4, %5 : vector<2x32xf32>
    %c0_5 = arith.constant 0 : index
    %c0_6 = arith.constant 0 : index
    %7 = vector.load %arg6[%c0_5, %c0_6] : memref<2x32xf32, #tpu.memory_space<vmem>>, vector<2x32xf32>
    tpu.vector_store %arg6[%c0_5, %c0_6], %6 {strides = array<i32>} : memref<2x32xf32, #tpu.memory_space<vmem>>, vector<2x32xf32>,
    %c0_i32_7 = arith.constant 0 : i32
    %8 = arith.cmpi eq, %arg1, %c0_i32_7 : i32
    %9 = arith.extui %8 : i1 to i32
    %c0_i32_8 = arith.constant 0 : i32
    %10 = arith.cmpi ne, %9, %c0_i32_8 : i32
    scf.if %10 {
      %c0_9 = arith.constant 0 : index
      %c0_10 = arith.constant 0 : index
      %11 = vector.load %arg6[%c0_9, %c0_10] : memref<2x32xf32, #tpu.memory_space<vmem>>, vector<2x32xf32>
      %c0_11 = arith.constant 0 : index
      %c0_12 = arith.constant 0 : index
      %12 = vector.load %arg3[%c0_11, %c0_12] : memref<32x32xf32, #tpu.memory_space<vmem>>, vector<32x32xf32>
      %cst_13 = arith.constant dense<0.000000e+00> : vector<2x32xf32>
      %13 = tpu.matmul %11, %12, %cst_13 {dimension_numbers = #tpu.dot_dimension_numbers<[1], [0], [0], [1], [0, 0, 1, 1], [], []>} : vector<2x32xf32>, vector<32x32xf32>, vector<2x32xf32> -> vector<2x32xf32>
      %c0_14 = arith.constant 0 : index
      %c0_15 = arith.constant 0 : index
      %14 = vector.load %arg4[%c0_14, %c0_15] : memref<1x32xf32, #tpu.memory_space<vmem>>, vector<1x32xf32>
      %15 = vector.broadcast %14 : vector<1x32xf32> to vector<2x32xf32>
      %16 = arith.addf %13, %15 : vector<2x32xf32>
      %c0_16 = arith.constant 0 : index
      %c0_17 = arith.constant 0 : index
      %17 = vector.load %arg5[%c0_16, %c0_17] : memref<2x32xf32, #tpu.memory_space<vmem>>, vector<2x32xf32>
      tpu.vector_store %arg5[%c0_16, %c0_17], %16 {strides = array<i32>} : memref<2x32xf32, #tpu.memory_space<vmem>>, vector<2x32xf32>,
    } else {
    }
    return
  }
  func.func @transform_0(%arg0: i32, %arg1: i32) -> (i32, i32, i32) {
    %c0_i32 = arith.constant 0 : i32
    %c0_i32_0 = arith.constant 0 : i32
    return %arg0, %arg1, %c0_i32 : i32, i32, i32
  }
  func.func @transform_1(%arg0: i32, %arg1: i32) -> (i32, i32) {
    %c0_i32 = arith.constant 0 : i32
    %c0_i32_0 = arith.constant 0 : i32
    %c0_i32_1 = arith.constant 0 : i32
    return %c0_i32, %c0_i32_0 : i32, i32
  }
  func.func @transform_2(%arg0: i32, %arg1: i32) -> (i32, i32) {
    %c0_i32 = arith.constant 0 : i32
    %c0_i32_0 = arith.constant 0 : i32
    %c0_i32_1 = arith.constant 0 : i32
    return %c0_i32, %c0_i32_0 : i32, i32
  }
  func.func @transform_3(%arg0: i32, %arg1: i32) -> (i32, i32) {
    %c0_i32 = arith.constant 0 : i32
    %c0_i32_0 = arith.constant 0 : i32
    return %arg0, %c0_i32 : i32, i32
  }
}

</mosaic_0001>

<llo_original>
// kernel: tpu_custom_call.1
$region0: #{tpu_custom_call.1}
  #allocation0 [shape = 'u32[]', space=smem, size = 0x4, offset = 0x4, fixed_abs, tag = 'smem constant byte address 0x4 - core index']
  #allocation1 [shape = 'u32[144,128]{1,0:T(1,128)}', space=vmem, size = 0x12000, scoped, tag = 'internal scratch']
  #allocation2 [shape = 'f32[2,32]{1,0:T(2,128)}', space=vmem, size = 0x400, scoped, tag = 'scratch operand']
  %s0 = inlined_call_operand.hbm [shape: f32[2,8,32], index: 0, kind: input, shape index: {}]
  %s1 = inlined_call_operand.hbm [shape: f32[32,32], index: 1, kind: input, shape index: {}]
  %s2 = inlined_call_operand.vmem [shape: f32[1,32], index: 2, kind: input, shape index: {}]
  %s3 = inlined_call_operand.hbm [shape: f32[2,32], index: 3, kind: output, shape index: {}]
  %s4 = sld [smem:[#allocation0]]
  $region38: #{tpu_custom_call.1} parent=0
    _
  %s6 = ssub.s32 1, %s4
  %s7 = scalar_select 0, %s6, %s4
  $region1: #{tpu_custom_call.1} parent=0
    #allocation3 [shape = 'u8[8192]{0}', space=vmem, size = 0x2000, scoped, tag = 'input window, operand 0, single buffered']
    #allocation4 [shape = 's32[1]{0}', space=sflag, size = 0x4, scoped, tag = 'scoped memory for tpu_custom_call.1']
    #allocation5 [shape = 's32[1]{0}', space=sflag, size = 0x4, scoped, tag = 'scoped memory for tpu_custom_call.1']
    #allocation6 [shape = 'u8[16384]{0}', space=vmem, size = 0x4000, scoped, tag = 'input window, operand 1, single buffered']
    #allocation7 [shape = 's32[1]{0}', space=sflag, size = 0x4, scoped, tag = 'scoped memory for tpu_custom_call.1']
    #allocation8 [shape = 'u8[1024]{0}', space=vmem, size = 0x400, scoped, tag = 'output window, operand 0, single buffered']
    %8 = vsyncpa [#allocation4], 0
    %9 = vsyncpa [#allocation7], 0
    %10 = vsyncpa [#allocation5], 0
    // Predicated region
    $region2: #{tpu_custom_call.1} parent=1 // pred_check
      _
    $region3: #{tpu_custom_call.1} parent=1 // pred_check_branch
      %12 = sbr.rel (0) target = $region5
    $region4: #{tpu_custom_call.1} parent=1 // pred_region
      %s14 = ssub.s32 256, 256
      %15 = vsyncadd [#allocation4], %s14
      %s16 = sshll.u32 [#allocation3], 4
      %s17 = int_to_ptr.vmem [resolvable:$true] %s16
      %22 = dma.hbm_to_vmem [thread:$0]  %s0, 256, %s17, [#allocation4], 128, 128, 8
    $region5: #{tpu_custom_call.1} parent=1 // pred_fallthru
      _
    // Predicated region
    $region6: #{tpu_custom_call.1} parent=1 // pred_check
      _
    $region7: #{tpu_custom_call.1} parent=1 // pred_check_branch
      %24 = sbr.rel (0) target = $region9
    $region8: #{tpu_custom_call.1} parent=1 // pred_region
      %s26 = ssub.s32 512, 512
      %27 = vsyncadd [#allocation7], %s26
      %s28 = sshll.u32 [#allocation6], 4
      %s29 = int_to_ptr.vmem [resolvable:$true] %s28
      %34 = dma.hbm_to_vmem [thread:$0]  %s1, 512, %s29, [#allocation7], 128, 128, 8
    $region9: #{tpu_custom_call.1} parent=1 // pred_fallthru
      _
    // Predicated region
    $region10: #{tpu_custom_call.1} parent=1 // pred_check
      _
    $region11: #{tpu_custom_call.1} parent=1 // pred_check_branch
      %36 = sbr.rel (0) target = $region13
    $region12: #{tpu_custom_call.1} parent=1 // pred_region
      _
    $region13: #{tpu_custom_call.1} parent=1 // pred_fallthru
      _
    // Predicated region
    $region14: #{tpu_custom_call.1} parent=1 // pred_check
      _
    $region15: #{tpu_custom_call.1} parent=1 // pred_check_branch
      %38 = sbr.rel (0) target = $region17
    $region16: #{tpu_custom_call.1} parent=1 // pred_region
      %39 = dma.done [#allocation4], 256
    $region17: #{tpu_custom_call.1} parent=1 // pred_fallthru
      _
    // Predicated region
    $region18: #{tpu_custom_call.1} parent=1 // pred_check
      _
    $region19: #{tpu_custom_call.1} parent=1 // pred_check_branch
      %41 = sbr.rel (0) target = $region21
    $region20: #{tpu_custom_call.1} parent=1 // pred_region
      %42 = dma.done [#allocation7], 512
    $region21: #{tpu_custom_call.1} parent=1 // pred_fallthru
      _
    %p43 = scmp.eq.s32.totalorder 0, 0
    // Predicated region
    $region22: #{tpu_custom_call.1} parent=1 // pred_check
      %p44 = pneg %p43
    $region23: #{tpu_custom_call.1} parent=1 // pred_check_branch
      %46 = sbr.rel (%p44) target = $region25
    $region24: #{tpu_custom_call.1} parent=1 // pred_region
      %vm47 = vcmask 254976
      %48 = vst.msk [vmem:[#allocation2] sm:$0x3] %vm47, 0.0
    $region25: #{tpu_custom_call.1} parent=1 // pred_fallthru
      _
    %v49 = vld [vmem:[#allocation3] sm:$0xff]
    %v50 = vld [vmem:[#allocation3 + $0x8] sm:$0xff]
    %v51 = vld [vmem:[#allocation2] sm:$0x3]
    %vm52 = vcmask 261120
    %v53 = vsel %vm52, %v49, 0.0
    %v54 = vrot.slane %v53, 4
    %v55 = vadd.f32 %v53, %v54
    %v56 = vrot.slane %v55, 2
    %v57 = vadd.f32 %v55, %v56
    %v58 = vrot.slane %v57, 1
    %v59 = vadd.f32 %v57, %v58
    %v60 = vsel %vm52, %v50, 0.0
    %v61 = vrot.slane %v60, 4
    %v62 = vadd.f32 %v60, %v61
    %v63 = vrot.slane %v62, 2
    %v64 = vadd.f32 %v62, %v63
    %v65 = vrot.slane %v64, 1
    %v66 = vadd.f32 %v64, %v65
    %vm69 = vcmask 1041409
    %v70 = vsel %vm69, %v66, %v59
    %v72 = vadd.f32 %v51, %v70
    %vm73 = vcmask 254976
    %74 = vst.msk [vmem:[#allocation2] sm:$0x3] %vm73, %v72
    // Predicated region
    $region26: #{tpu_custom_call.1} parent=1 // pred_check
      %p75 = pneg %p43
    $region27: #{tpu_custom_call.1} parent=1 // pred_check_branch
      %77 = sbr.rel (%p75) target = $region29
    $region28: #{tpu_custom_call.1} parent=1 // pred_region
      %v78 = vld [vmem:[#allocation2] sm:$0x3]
      %v79 = vld [vmem:[#allocation6] sm:$0xff]
      %v80 = vld [vmem:[#allocation6 + $0x8] sm:$0xff]
      %v81 = vld [vmem:[#allocation6 + $0x10] sm:$0xff]
      %v82 = vld [vmem:[#allocation6 + $0x18] sm:$0xff]
      %v83 = vld [vmem:[%s2] sm:$0x1]
      %v85 = vlaneseq
      %v86 = vshrl.u32 %v85, 7
      %v87 = vsub.s32 0, %v86
      %v88 = vrot.slane %v83, %v87
      %v91 = vsel %vm52, %v78, 0
      %93 = vmatprep.subr.mxu0 0.0
      %94 = vmatpush1.msra.mxu0 %v79
      %95 = vmatprep.subr.mxu0 0.0
      %96 = vmatpush1.msra.mxu0 %v80
      %97 = vmatprep.subr.mxu0 0.0
      %98 = vmatpush1.msra.mxu0 %v81
      %99 = vmatprep.subr.mxu0 0.0
      %100 = vmatpush1.msra.mxu0 %v82
      %101 = vmatprep.subr.mxu0 0.0
      %102 = vmatpush1.msra.mxu0 0.0
      %103 = vmatprep.subr.mxu0 0.0
      %104 = vmatpush1.msra.mxu0 0.0
      %105 = vmatprep.subr.mxu0 0.0
      %106 = vmatpush1.msra.mxu0 0.0
      %107 = vmatprep.subr.mxu0 0.0
      %108 = vmatpush1.msra.mxu0 0.0
      %109 = vmatprep.subr.mxu0 0.0
      %110 = vmatpush1.msra.mxu0 0.0
      %111 = vmatprep.subr.mxu0 0.0
      %112 = vmatpush1.msra.mxu0 0.0
      %113 = vmatprep.subr.mxu0 0.0
      %114 = vmatpush1.msra.mxu0 0.0
      %115 = vmatprep.subr.mxu0 0.0
      %116 = vmatpush1.msra.mxu0 0.0
      %117 = vmatprep.subr.mxu0 0.0
      %118 = vmatpush1.msra.mxu0 0.0
      %119 = vmatprep.subr.mxu0 0.0
      %120 = vmatpush1.msra.mxu0 0.0
      %121 = vmatprep.subr.mxu0 0.0
      %122 = vmatpush1.msra.mxu0 0.0
      %123 = vmatprep.subr.mxu0 0.0
      %124 = vmatpush1.msra.mxu0 0.0
      %125 = vmatprep.subr.mxu0 0.0
      %126 = vmatpush1.msra.mxu0 0.0
      %127 = vmatprep.subr.mxu0 0.0
      %128 = vmatpush1.msra.mxu0 0.0
      %129 = vmatprep.subr.mxu0 0.0
      %130 = vmatpush1.msra.mxu0 0.0
      %131 = vmatprep.subr.mxu0 0.0
      %132 = vmatpush1.msra.mxu0 0.0
      %133 = vmatprep.subr.mxu0 0.0
      %134 = vmatpush1.msra.mxu0 0.0
      %135 = vmatprep.subr.mxu0 0.0
      %136 = vmatpush1.msra.mxu0 0.0
      %137 = vmatprep.subr.mxu0 0.0
      %138 = vmatpush1.msra.mxu0 0.0
      %139 = vmatprep.subr.mxu0 0.0
      %140 = vmatpush1.msra.mxu0 0.0
      %141 = vmatprep.subr.mxu0 0.0
      %142 = vmatpush1.msra.mxu0 0.0
      %143 = vmatprep.subr.mxu0 0.0
      %144 = vmatpush1.msra.mxu0 0.0
      %145 = vmatprep.subr.mxu0 0.0
      %146 = vmatpush1.msra.mxu0 0.0
      %147 = vmatprep.subr.mxu0 0.0
      %148 = vmatpush1.msra.mxu0 0.0
      %149 = vmatprep.subr.mxu0 0.0
      %150 = vmatpush1.msra.mxu0 0.0
      %151 = vmatprep.subr.mxu0 0.0
      %152 = vmatpush1.msra.mxu0 0.0
      %153 = vmatprep.subr.mxu0 0.0
      %154 = vmatpush1.msra.mxu0 0.0
      %155 = vmatprep.subr.mxu0 0.0
      %156 = vmatpush1.msra.mxu0 0.0
      %157 = vmatprep.mubr.f32.mxu0 0.0
      %158 = vmatmul.mubr.f32.gmra.mrb[0].mxu0 %v91
      %v159 = vpop.f32.mrb[0].mxu0
      %v160 = vadd.f32 %v88, %v159
      %v161 = vpop.f32.mrb[0].mxu0
      %162 = vdwg.mxu0
      %163 = vst.msk [vmem:[#allocation8] sm:$0x3] %vm73, %v160
    $region29: #{tpu_custom_call.1} parent=1 // pred_fallthru
      _
    // Predicated region
    $region30: #{tpu_custom_call.1} parent=1 // pred_check
      _
    $region31: #{tpu_custom_call.1} parent=1 // pred_check_branch
      %165 = sbr.rel (0) target = $region33
    $region32: #{tpu_custom_call.1} parent=1 // pred_region
      %s167 = ssub.s32 32, 32
      %168 = vsyncadd [#allocation5], %s167
      %s170 = sshll.u32 [#allocation8], 4
      %s171 = int_to_ptr.vmem [resolvable:$true] %s170
      %173 = dma.vmem_to_hbm [thread:$0]  %s171, 32, %s3, [#allocation5]
    $region33: #{tpu_custom_call.1} parent=1 // pred_fallthru
      _
    // Predicated region
    $region34: #{tpu_custom_call.1} parent=1 // pred_check
      _
    $region35: #{tpu_custom_call.1} parent=1 // pred_check_branch
      %175 = sbr.rel (0) target = $region37
    $region36: #{tpu_custom_call.1} parent=1 // pred_region
      %176 = dma.done [#allocation5], 32
    $region37: #{tpu_custom_call.1} parent=1 // pred_fallthru
      _
    %177 = vsyncpa [#allocation4], 1
    %178 = vsyncpa [#allocation7], 1
    %179 = vsyncpa [#allocation5], 1

</llo_original>
